<compile_context>
chip_gen: v5e
topology: v5e:2x2
jax: 0.10.0
libtpu: 0.0.40
codegen_flags: <defaults>
</compile_context>

<pallas_src>
import types

import jax
import jax.numpy as jnp
from jax import lax
from jax.experimental import pallas as pl
from jax.experimental.pallas import tpu as pltpu


# ---------------------------------------------------------------------------
# Generation-aware VMEM budget
# ---------------------------------------------------------------------------
def _vmem_budget_bytes():
    """~75% of this generation's VMEM (48 MiB on v7x, ~96 MiB on v5e/v6e)."""
    phys = None
    try:
        info = pltpu.get_tpu_info()
        phys = getattr(info, "vmem_capacity_bytes", None)
    except Exception:
        phys = None
    if not phys:
        phys = 64 * 1024 * 1024  # conservative: v7x per-TensorCore VMEM
    return int(phys * 3 // 4)


def _pick_batch_tile(B):
    # Bt only appears as the third-from-last block dim, so any divisor of B is
    # layout-legal.  Prefer >= 2 batch steps (keeps both v7x TensorCores busy).
    if B <= 1:
        return max(B, 1)
    for bt in range(B // 2, 0, -1):
        if B % bt == 0:
            return bt
    return B


# ---------------------------------------------------------------------------
# Kernels
# ---------------------------------------------------------------------------
_DN = (((2,), (1,)), ((0,), (0,)))  # 'b1s,bsh->b1h' : contract seq, batch on b


def _avg_kernel(mask_ref, h_ref, scale_ref, out_ref, acc_ref):
    s = pl.program_id(2)

    @pl.when(s == 0)
    def _():
        acc_ref[...] = jnp.zeros_like(acc_ref)

    # Mask-weighted sum over the sequence chunk on the MXU, f32 accumulation.
    acc_ref[...] += lax.dot_general(
        mask_ref[...], h_ref[...], dimension_numbers=_DN,
        preferred_element_type=jnp.float32)

    @pl.when(s == pl.num_programs(2) - 1)
    def _():
        out_ref[...] = (acc_ref[...] * scale_ref[...]).astype(out_ref.dtype)


def _avg_two_kernel(mask_ref, ha_ref, hb_ref, scale_ref, out_ref, acc_ref):
    s = pl.program_id(2)

    @pl.when(s == 0)
    def _():
        acc_ref[...] = jnp.zeros_like(acc_ref)

    m = mask_ref[...]
    # Two separate f32-accumulated dots (avoids native-dtype rounding of ha+hb);
    # the 1/2 of the layer average is folded into `scale`.
    acc_ref[...] += lax.dot_general(m, ha_ref[...], dimension_numbers=_DN,
                                    preferred_element_type=jnp.float32)
    acc_ref[...] += lax.dot_general(m, hb_ref[...], dimension_numbers=_DN,
                                    preferred_element_type=jnp.float32)

    @pl.when(s == pl.num_programs(2) - 1)
    def _():
        out_ref[...] = (acc_ref[...] * scale_ref[...]).astype(out_ref.dtype)


# ---------------------------------------------------------------------------
# pallas_call wrapper for the masked-mean variants
# ---------------------------------------------------------------------------
def _masked_mean_call(attention_mask, hiddens, scale_const):
    """hiddens: tuple of one or two (B, S, H) arrays summed before masked-mean."""
    B, S, H = hiddens[0].shape
    dtype = hiddens[0].dtype
    itemsize = jnp.dtype(dtype).itemsize
    n_hid = len(hiddens)

    budget = _vmem_budget_bytes()
    Bt = _pick_batch_tile(B)
    # If the batch axis offers only one parallel step, split H for v7x's 2 TCs.
    Ht = H // 2 if (B // Bt < 2 and H % 256 == 0) else H

    # Hoisted denominator: tiny (B,1,1) f32 scale computed once in plain JAX.
    # NOTE: rows with sum(mask)==0 divide by zero exactly like the PyTorch ref.
    denom = jnp.sum(attention_mask.astype(jnp.float32), axis=-1)
    scale = (scale_const / denom).reshape(B, 1, 1).astype(jnp.float32)

    def fits(st):
        need = 2 * (n_hid * Bt * st * Ht * itemsize   # hidden blocks (dbl-buf)
                    + Bt * st * itemsize              # mask block
                    + Bt * 4                          # scale block
                    + Bt * Ht * itemsize)             # output block
        need += Bt * Ht * 4 + (256 << 10)             # f32 accumulator + slack
        return need <= budget

    # Sequence tile: largest 128-multiple dividing (possibly padded) S that
    # fits the budget; irregular S that would overflow VMEM is zero-padded
    # (padded mask entries are 0, so they contribute nothing).
    S_p = S
    if S % 128 != 0 and not fits(S):
        S_p = ((S + 127) // 128) * 128
    cands = sorted((c for c in range(128, S_p + 1, 128) if S_p % c == 0),
                   reverse=True)
    St = None
    for c in cands:
        if fits(c):
            St = c
            break
    if St is None:
        St = cands[-1] if cands else S_p

    if S_p != S:
        pad = S_p - S
        attention_mask = jnp.pad(attention_mask, ((0, 0), (0, pad)))
        hiddens = tuple(jnp.pad(h, ((0, 0), (0, pad), (0, 0))) for h in hiddens)

    # Mask in the hidden dtype (0/1 exact in bf16) so it feeds the MXU directly.
    mask3 = attention_mask.astype(dtype).reshape(B, 1, S_p)

    hid_spec = pl.BlockSpec((Bt, St, Ht), lambda b, h, s: (b, s, h))
    in_specs = ([pl.BlockSpec((Bt, 1, St), lambda b, h, s: (b, 0, s))]
                + [hid_spec] * n_hid
                + [pl.BlockSpec((Bt, 1, 1), lambda b, h, s: (b, 0, 0))])
    # Output block constant across the seq axis -> resident, finalized on the
    # last step; H kept lane-dense.
    out_spec = pl.BlockSpec((Bt, 1, Ht), lambda b, h, s: (b, 0, h))

    kernel = _avg_kernel if n_hid == 1 else _avg_two_kernel

    out3 = pl.pallas_call(
        kernel,
        out_shape=jax.ShapeDtypeStruct((B, 1, H), dtype),
        grid=(B // Bt, H // Ht, S_p // St),
        in_specs=in_specs,
        out_specs=out_spec,
        scratch_shapes=[pltpu.VMEM((Bt, 1, Ht), jnp.float32)],
        compiler_params=pltpu.CompilerParams(
            dimension_semantics=("parallel", "parallel", "arbitrary"),
            vmem_limit_bytes=int(budget)),
    )(mask3, *hiddens, scale)
    return out3.reshape(B, H)


def cls_pool(last_hidden):
    # Pure gather with zero compute: a plain XLA slice is strictly faster than
    # a Pallas call here (no extra HBM round trip, no launch/step overhead).
    return last_hidden[:, 0]


def avg_pool(attention_mask, last_hidden):
    return _masked_mean_call(attention_mask, (last_hidden,), 1.0)


def avg_two_pool(attention_mask, hidden_a, hidden_b):
    return _masked_mean_call(attention_mask, (hidden_a, hidden_b), 0.5)


# ---------------------------------------------------------------------------
# Pooler module (parameter-free, mirrors the PyTorch forward semantics)
# ---------------------------------------------------------------------------
class Pooler:
    def __init__(self, pooler_type):
        assert pooler_type in [
            'cls', 'cls_before_pooler', 'avg', 'avg_top2', 'avg_first_last'
        ], 'unrecognized pooling type %s' % pooler_type
        self.pooler_type = pooler_type

    def __call__(self, attention_mask, outputs):
        last_hidden = outputs.last_hidden_state
        hidden_states = outputs.hidden_states
        if self.pooler_type in ['cls_before_pooler', 'cls']:
            return cls_pool(last_hidden)
        elif self.pooler_type == 'avg':
            return avg_pool(attention_mask, last_hidden)
        elif self.pooler_type == 'avg_first_last':
            return avg_two_pool(attention_mask, hidden_states[0], hidden_states[-1])
        elif self.pooler_type == 'avg_top2':
            return avg_two_pool(attention_mask, hidden_states[-1], hidden_states[-2])
        else:
            raise NotImplementedError


# ---------------------------------------------------------------------------
# Reference (pure JAX) for verification
# ---------------------------------------------------------------------------
def _ref(pooler_type, attention_mask, outputs):
    last_hidden = outputs.last_hidden_state
    hs = outputs.hidden_states
    if pooler_type in ['cls_before_pooler', 'cls']:
        return last_hidden[:, 0]
    if pooler_type == 'avg':
        return (last_hidden * attention_mask[..., None]).sum(1) / \
               attention_mask.sum(-1)[..., None]
    if pooler_type == 'avg_first_last':
        h = (hs[0] + hs[-1]) / 2.0
        return (h * attention_mask[..., None]).sum(1) / attention_mask.sum(-1)[..., None]
    if pooler_type == 'avg_top2':
        h = (hs[-1] + hs[-2]) / 2.0
        return (h * attention_mask[..., None]).sum(1) / attention_mask.sum(-1)[..., None]
    raise NotImplementedError


if __name__ == "__main__":
    B, S, H, L = 2, 8, 32, 3  # batch, seq, hidden, number of hidden layers

    key = jax.random.PRNGKey(0)
    k_layers, k_mask = jax.random.split(key)

    # deterministic synthetic "transformer outputs"
    hidden_states = tuple(
        jax.random.normal(jax.random.fold_in(k_layers, i), (B, S, H), jnp.float32)
        for i in range(L)
    )
    last_hidden = hidden_states[-1]
    # attention mask: first row fully valid, second row half-padded
    attention_mask = jnp.array(
        [[1.0] * S, [1.0] * (S // 2) + [0.0] * (S // 2)], dtype=jnp.float32
    )

    outputs = types.SimpleNamespace(
        last_hidden_state=last_hidden,
        pooler_output=last_hidden[:, 0],   # unused by these pooler types
        hidden_states=hidden_states,
    )

    # Tolerance accommodates MXU default precision on f32 demo inputs (the MXU
    # may round operands per pass); accumulation itself is f32.  This is still
    # tight enough to catch any masking / denominator / layer-selection bug.
    ok = True
    for ptype in ['cls', 'cls_before_pooler', 'avg', 'avg_top2', 'avg_first_last']:
        pooler = Pooler(ptype)
        out = pooler(attention_mask, outputs)
        out = jax.block_until_ready(out)
        ref = _ref(ptype, attention_mask, outputs)
        if out.shape != (B, H):
            ok = False
        if not jnp.allclose(out, ref, atol=2e-2, rtol=2e-2):
            ok = False

    if ok:
        print("KERNEL_OK")
</pallas_src>

<mosaic_0001>
module attributes {stable_mosaic.version = 11 : i64} {
  func.func @_avg_kernel(%arg0: i32, %arg1: i32, %arg2: i32, %arg3: memref<1x1x8xf32, #tpu.memory_space<vmem>>, %arg4: memref<1x8x32xf32, #tpu.memory_space<vmem>>, %arg5: memref<1x1x1xf32, #tpu.memory_space<vmem>>, %arg6: memref<1x1x32xf32, #tpu.memory_space<vmem>>, %arg7: memref<1x1x32xf32, #tpu.memory_space<vmem>>) attributes {dimension_semantics = [#tpu.dimension_semantics<parallel>, #tpu.dimension_semantics<parallel>, #tpu.dimension_semantics<arbitrary>], iteration_bounds = array<i64: 2, 1, 1>, scalar_prefetch = 0 : i64, scratch_operands = 1 : i64, tpu.core_type = #tpu.core_type<tc>, window_params = [{transform_indices = @transform_0, window_bounds = array<i64: 1, 1, 8>}, {transform_indices = @transform_1, window_bounds = array<i64: 1, 8, 32>}, {transform_indices = @transform_2, window_bounds = array<i64: 1, 1, 1>}, {transform_indices = @transform_3, window_bounds = array<i64: 1, 1, 32>}]} {
    %c0_i32 = arith.constant 0 : i32
    %0 = arith.cmpi eq, %arg2, %c0_i32 : i32
    %1 = arith.extui %0 : i1 to i32
    %c0_i32_0 = arith.constant 0 : i32
    %2 = arith.cmpi ne, %1, %c0_i32_0 : i32
    scf.if %2 {
      %cst_14 = arith.constant 0.000000e+00 : f32
      %12 = vector.broadcast %cst_14 : f32 to vector<1x1x32xf32>
      %c0_15 = arith.constant 0 : index
      %c0_16 = arith.constant 0 : index
      %c0_17 = arith.constant 0 : index
      %13 = vector.load %arg7[%c0_15, %c0_16, %c0_17] : memref<1x1x32xf32, #tpu.memory_space<vmem>>, vector<1x1x32xf32>
      tpu.vector_store %arg7[%c0_15, %c0_16, %c0_17], %12 {strides = array<i32>} : memref<1x1x32xf32, #tpu.memory_space<vmem>>, vector<1x1x32xf32>,
    } else {
    }
    %c0 = arith.constant 0 : index
    %c0_1 = arith.constant 0 : index
    %c0_2 = arith.constant 0 : index
    %3 = vector.load %arg7[%c0, %c0_1, %c0_2] : memref<1x1x32xf32, #tpu.memory_space<vmem>>, vector<1x1x32xf32>
    %c0_3 = arith.constant 0 : index
    %c0_4 = arith.constant 0 : index
    %c0_5 = arith.constant 0 : index
    %4 = vector.load %arg3[%c0_3, %c0_4, %c0_5] : memref<1x1x8xf32, #tpu.memory_space<vmem>>, vector<1x1x8xf32>
    %c0_6 = arith.constant 0 : index
    %c0_7 = arith.constant 0 : index
    %c0_8 = arith.constant 0 : index
    %5 = vector.load %arg4[%c0_6, %c0_7, %c0_8] : memref<1x8x32xf32, #tpu.memory_space<vmem>>, vector<1x8x32xf32>
    %cst = arith.constant dense<0.000000e+00> : vector<1x1x32xf32>
    %6 = tpu.matmul %4, %5, %cst {dimension_numbers = #tpu.dot_dimension_numbers<[2], [1], [1], [2], [0, 0, 0, 1, 1, 2], [0], [0]>} : vector<1x1x8xf32>, vector<1x8x32xf32>, vector<1x1x32xf32> -> vector<1x1x32xf32>
    %7 = arith.addf %3, %6 : vector<1x1x32xf32>
    %c0_9 = arith.constant 0 : index
    %c0_10 = arith.constant 0 : index
    %c0_11 = arith.constant 0 : index
    %8 = vector.load %arg7[%c0_9, %c0_10, %c0_11] : memref<1x1x32xf32, #tpu.memory_space<vmem>>, vector<1x1x32xf32>
    tpu.vector_store %arg7[%c0_9, %c0_10, %c0_11], %7 {strides = array<i32>} : memref<1x1x32xf32, #tpu.memory_space<vmem>>, vector<1x1x32xf32>,
    %c0_i32_12 = arith.constant 0 : i32
    %9 = arith.cmpi eq, %arg2, %c0_i32_12 : i32
    %10 = arith.extui %9 : i1 to i32
    %c0_i32_13 = arith.constant 0 : i32
    %11 = arith.cmpi ne, %10, %c0_i32_13 : i32
    scf.if %11 {
      %c0_14 = arith.constant 0 : index
      %c0_15 = arith.constant 0 : index
      %c0_16 = arith.constant 0 : index
      %12 = vector.load %arg7[%c0_14, %c0_15, %c0_16] : memref<1x1x32xf32, #tpu.memory_space<vmem>>, vector<1x1x32xf32>
      %c0_17 = arith.constant 0 : index
      %c0_18 = arith.constant 0 : index
      %c0_19 = arith.constant 0 : index
      %13 = vector.load %arg5[%c0_17, %c0_18, %c0_19] : memref<1x1x1xf32, #tpu.memory_space<vmem>>, vector<1x1x1xf32>
      %14 = vector.broadcast %13 : vector<1x1x1xf32> to vector<1x1x32xf32>
      %15 = arith.mulf %12, %14 : vector<1x1x32xf32>
      %c0_20 = arith.constant 0 : index
      %c0_21 = arith.constant 0 : index
      %c0_22 = arith.constant 0 : index
      %16 = vector.load %arg6[%c0_20, %c0_21, %c0_22] : memref<1x1x32xf32, #tpu.memory_space<vmem>>, vector<1x1x32xf32>
      tpu.vector_store %arg6[%c0_20, %c0_21, %c0_22], %15 {strides = array<i32>} : memref<1x1x32xf32, #tpu.memory_space<vmem>>, vector<1x1x32xf32>,
    } else {
    }
    return
  }
  func.func @transform_0(%arg0: i32, %arg1: i32, %arg2: i32) -> (i32, i32, i32) {
    %c0_i32 = arith.constant 0 : i32
    %c0_i32_0 = arith.constant 0 : i32
    return %arg0, %c0_i32, %arg2 : i32, i32, i32
  }
  func.func @transform_1(%arg0: i32, %arg1: i32, %arg2: i32) -> (i32, i32, i32) {
    %c0_i32 = arith.constant 0 : i32
    return %arg0, %arg2, %arg1 : i32, i32, i32
  }
  func.func @transform_2(%arg0: i32, %arg1: i32, %arg2: i32) -> (i32, i32, i32) {
    %c0_i32 = arith.constant 0 : i32
    %c0_i32_0 = arith.constant 0 : i32
    %c0_i32_1 = arith.constant 0 : i32
    return %arg0, %c0_i32, %c0_i32_0 : i32, i32, i32
  }
  func.func @transform_3(%arg0: i32, %arg1: i32, %arg2: i32) -> (i32, i32, i32) {
    %c0_i32 = arith.constant 0 : i32
    %c0_i32_0 = arith.constant 0 : i32
    return %arg0, %c0_i32, %arg1 : i32, i32, i32
  }
}

</mosaic_0001>

<llo_original>
// kernel: tpu_custom_call.1
$region0: #{tpu_custom_call.1}
  #allocation0 [shape = 'u32[]', space=smem, size = 0x4, offset = 0x4, fixed_abs, tag = 'smem constant byte address 0x4 - core index']
  #allocation1 [shape = 'u32[72,128]{1,0:T(1,128)}', space=vmem, size = 0x9000, scoped, tag = 'internal scratch']
  #allocation2 [shape = 'f32[1,1,32]{2,1,0:T(1,128)}', space=vmem, size = 0x200, scoped, tag = 'scratch operand']
  %s0 = inlined_call_operand.vmem [shape: f32[2,1,8], index: 0, kind: input, shape index: {}]
  %s1 = inlined_call_operand.hbm [shape: f32[2,8,32], index: 1, kind: input, shape index: {}]
  %s2 = inlined_call_operand.vmem [shape: f32[2,1,1], index: 2, kind: input, shape index: {}]
  %s3 = inlined_call_operand.hbm [shape: f32[2,1,32], index: 3, kind: output, shape index: {}]
  %s4 = sld [smem:[#allocation0]]
  $region57: #{tpu_custom_call.1} parent=0
    _
  %s6 = ssub.s32 1, %s4
  %s7 = scalar_select 0, %s6, %s4
  $region1: #{tpu_custom_call.1} parent=0
    #allocation3 [shape = 'u8[8192]{0}', space=vmem, size = 0x2000, scoped, tag = 'input window, operand 1']
    #allocation4 [shape = 's32[2]{0}', space=sflag, size = 0x8, scoped, tag = 'scoped memory for tpu_custom_call.1']
    #allocation5 [shape = 's32[2]{0}', space=sflag, size = 0x8, scoped, tag = 'scoped memory for tpu_custom_call.1']
    #allocation6 [shape = 'u8[1024]{0}', space=vmem, size = 0x400, scoped, tag = 'output window, operand 0']
    %8 = vsyncpa [#allocation4], 0
    %s9 = scalar_lea.sflag [#allocation4], 1
    %10 = vsyncpa %s9, 0
    %11 = vsyncpa [#allocation5], 0
    %s12 = scalar_lea.sflag [#allocation5], 1
    %13 = vsyncpa %s12, 0
    loop: start=0, step=1, limit=4
    $region2: #{tpu_custom_call.1} parent=1 // loop_pre_header
      _
    $region3: #{tpu_custom_call.1} parent=1 // loop_header
      %s15 = sphi 0, %s19
      %p16 = scmp.ge.s32.totalorder %s15, 4
      %s22 = sphi 0, %s41
      %s23 = sphi 0, %s37
      %s24 = sphi 0, %s33
      %s25 = sphi 0, %s22
      %s26 = sphi 0, %s23
      %s27 = sphi 0, %s24
      %s28 = sphi 0, %s25
      %s29 = sphi 0, %s26
      %s30 = sphi 0, %s27
      %s46 = sphi 0, %s48
      %s49 = sphi 0, %s46
      %s50 = sphi 0, %s49
      %s66 = sphi 0, %s50
      %s76 = sphi 0, %s78
      %s79 = sphi 0, %s76
      %s80 = sphi 0, %s79
      %s96 = sphi 0, %s80
      %s102 = sphi 0, %s104
      %s105 = sphi 0, %s102
      %s106 = sphi 0, %s105
      %s122 = sphi 0, %s106
      %s130 = sphi 0, %s132
      %s133 = sphi 0, %s130
      %s134 = sphi 0, %s133
      %s150 = sphi 0, %s134
    $region4: #{tpu_custom_call.1} parent=1 // loop_header_branch
      %18 = sbr.rel (%p16) target = $region8
    $region5: #{tpu_custom_call.1} parent=1 // loop_body
      %s20 = ssub.s32 %s15, 1
      %s21 = ssub.s32 %s15, 2
      %s31 = sadd.s32 1, %s24
      %p32 = scmp.ge.s32.totalorder %s31, 1
      %s33 = scalar_select %p32, 0, %s31
      %s34 = sadd.s32 1, %s23
      %s35 = scalar_select %p32, %s34, %s23
      %p36 = scmp.ge.s32.totalorder %s35, 1
      %s37 = scalar_select %p36, 0, %s35
      %s38 = sadd.s32 1, %s22
      %s39 = scalar_select %p36, %s38, %s22
      %p40 = scmp.ge.s32.totalorder %s39, 2
      %s41 = scalar_select %p40, 0, %s39
      %s42 = ssub.s32 %s22, %s41
      %s43 = ssub.s32 %s24, %s33
      %s44 = sor.u32 %s42, %s43
      %p45 = scmp.eq.s32.totalorder %s44, 0
      %s47 = sadd.s32 %s46, 1
      %s48 = scalar_select %p45, %s46, %s47
      %p51 = pneg %p45
      %p52 = scmp.eq.s32.totalorder %s15, 1
      %p53 = por %p51, %p52
      %p54 = scmp.ne.s32.totalorder %s46, %s49
      %p55 = scmp.eq.s32.totalorder %s15, 0
      %p56 = por %p54, %p55
      %p57 = scmp.ne.s32.totalorder %s46, %s49
      %p58 = scmp.eq.s32.totalorder %s20, 1
      %p59 = por %p57, %p58
      %p60 = scmp.ne.s32.totalorder %s49, %s50
      %p61 = scmp.eq.s32.totalorder %s20, 0
      %p62 = por %p60, %p61
      %p63 = scmp.ne.s32.totalorder %s49, %s50
      %p64 = scmp.eq.s32.totalorder %s21, 1
      %p65 = por %p63, %p64
      %p67 = scmp.ne.s32.totalorder %s50, %s66
      %p68 = scmp.eq.s32.totalorder %s21, 0
      %p69 = por %p67, %p68
      %s70 = ssub.s32 %s22, %s41
      %s71 = ssub.s32 %s24, %s33
      %s72 = sor.u32 %s70, %s71
      %s73 = ssub.s32 %s23, %s37
      %s74 = sor.u32 %s72, %s73
      %p75 = scmp.eq.s32.totalorder %s74, 0
      %s77 = sadd.s32 %s76, 1
      %s78 = scalar_select %p75, %s76, %s77
      %p81 = pneg %p75
      %p82 = scmp.eq.s32.totalorder %s15, 1
      %p83 = por %p81, %p82
      %p84 = scmp.ne.s32.totalorder %s76, %s79
      %p85 = scmp.eq.s32.totalorder %s15, 0
      %p86 = por %p84, %p85
      %p87 = scmp.ne.s32.totalorder %s76, %s79
      %p88 = scmp.eq.s32.totalorder %s20, 1
      %p89 = por %p87, %p88
      %p90 = scmp.ne.s32.totalorder %s79, %s80
      %p91 = scmp.eq.s32.totalorder %s20, 0
      %p92 = por %p90, %p91
      %p93 = scmp.ne.s32.totalorder %s79, %s80
      %p94 = scmp.eq.s32.totalorder %s21, 1
      %p95 = por %p93, %p94
      %p97 = scmp.ne.s32.totalorder %s80, %s96
      %p98 = scmp.eq.s32.totalorder %s21, 0
      %p99 = por %p97, %p98
      %s100 = ssub.s32 %s22, %s41
      %p101 = scmp.eq.s32.totalorder %s100, 0
      %s103 = sadd.s32 %s102, 1
      %s104 = scalar_select %p101, %s102, %s103
      %p107 = pneg %p101
      %p108 = scmp.eq.s32.totalorder %s15, 1
      %p109 = por %p107, %p108
      %p110 = scmp.ne.s32.totalorder %s102, %s105
      %p111 = scmp.eq.s32.totalorder %s15, 0
      %p112 = por %p110, %p111
      %p113 = scmp.ne.s32.totalorder %s102, %s105
      %p114 = scmp.eq.s32.totalorder %s20, 1
      %p115 = por %p113, %p114
      %p116 = scmp.ne.s32.totalorder %s105, %s106
      %p117 = scmp.eq.s32.totalorder %s20, 0
      %p118 = por %p116, %p117
      %p119 = scmp.ne.s32.totalorder %s105, %s106
      %p120 = scmp.eq.s32.totalorder %s21, 1
      %p121 = por %p119, %p120
      %p123 = scmp.ne.s32.totalorder %s106, %s122
      %p124 = scmp.eq.s32.totalorder %s21, 0
      %p125 = por %p123, %p124
      %s126 = ssub.s32 %s22, %s41
      %s127 = ssub.s32 %s23, %s37
      %s128 = sor.u32 %s126, %s127
      %p129 = scmp.eq.s32.totalorder %s128, 0
      %s131 = sadd.s32 %s130, 1
      %s132 = scalar_select %p129, %s130, %s131
      %p135 = pneg %p129
      %p136 = scmp.eq.s32.totalorder %s15, 1
      %p137 = por %p135, %p136
      %p138 = scmp.ne.s32.totalorder %s130, %s133
      %p139 = scmp.eq.s32.totalorder %s15, 0
      %p140 = por %p138, %p139
      %p141 = scmp.ne.s32.totalorder %s130, %s133
      %p142 = scmp.eq.s32.totalorder %s20, 1
      %p143 = por %p141, %p142
      %p144 = scmp.ne.s32.totalorder %s133, %s134
      %p145 = scmp.eq.s32.totalorder %s20, 0
      %p146 = por %p144, %p145
      %p147 = scmp.ne.s32.totalorder %s133, %s134
      %p148 = scmp.eq.s32.totalorder %s21, 1
      %p149 = por %p147, %p148
      %p151 = scmp.ne.s32.totalorder %s134, %s150
      %p152 = scmp.eq.s32.totalorder %s21, 0
      %p153 = por %p151, %p152
      %p154 = scmp.le.s32.totalorder 1, %s15
      %p155 = scmp.lt.s32.totalorder %s15, 3
      %p156 = pnand %p154, %p155
      %p157 = pneg %p156
      // Predicated region
      $region9: #{tpu_custom_call.1} parent=5 // pred_check
        _
      $region10: #{tpu_custom_call.1} parent=5 // pred_check_branch
        %159 = sbr.rel (%p156) target = $region12
      $region11: #{tpu_custom_call.1} parent=5 // pred_region
        %s160 = ssub.s32 %s15, 1
      $region12: #{tpu_custom_call.1} parent=5 // pred_fallthru
        _
      %p161 = scmp.lt.s32.totalorder %s15, 2
      // Predicated region
      $region13: #{tpu_custom_call.1} parent=5 // pred_check
        %p162 = pneg %p161
      $region14: #{tpu_custom_call.1} parent=5 // pred_check_branch
        %164 = sbr.rel (%p162) target = $region16
      $region15: #{tpu_custom_call.1} parent=5 // pred_region
        // Predicated region
        $region17: #{tpu_custom_call.1} parent=15 // pred_check
          %p165 = pneg %p56
        $region18: #{tpu_custom_call.1} parent=15 // pred_check_branch
          %167 = sbr.rel (%p165) target = $region20
        $region19: #{tpu_custom_call.1} parent=15 // pred_region
          %p168 = scmp.lt.s32.totalorder %s22, 1
          %s169 = scalar_select %p168, %s22, 1
          %p170 = scmp.lt.s32.totalorder %s24, 0
          %s171 = scalar_select %p170, %s24, 0
          %s172 = sadd.s32 %s171, %s169
          %s173 = scalar_lea.vmem %s0, %s172
        $region20: #{tpu_custom_call.1} parent=15 // pred_fallthru
          _
        // Predicated region
        $region21: #{tpu_custom_call.1} parent=15 // pred_check
          %p174 = pneg %p86
        $region22: #{tpu_custom_call.1} parent=15 // pred_check_branch
          %176 = sbr.rel (%p174) target = $region24
        $region23: #{tpu_custom_call.1} parent=15 // pred_region
          %s177 = sand.u32 %s76, 1
          %s178 = scalar_lea.sflag [#allocation4], %s177
          %s179 = sand.u32 %s76, 1
          %s180 = smul.addr %s179, 8
          %s181 = scalar_lea.vmem [#allocation3], %s180
          %183 = vsyncadd %s178, 0
          %s184 = sadd.s32 %s23, %s24
          %s185 = sadd.s32 %s184, %s22
          %s186 = smul.addr %s185, 8
          %s187 = scalar_lea.hbm %s1, %s186
          %s189 = sshll.u32 %s187, 4
          %s190 = int_to_ptr.hbm [resolvable:$true] %s189
          %s191 = sshll.u32 %s181, 4
          %s192 = int_to_ptr.vmem [resolvable:$true] %s191
          %194 = dma.hbm_to_vmem [thread:$0]  %s190, 128, %s192, %s178
        $region24: #{tpu_custom_call.1} parent=15 // pred_fallthru
          _
        // Predicated region
        $region25: #{tpu_custom_call.1} parent=15 // pred_check
          %p195 = pneg %p112
        $region26: #{tpu_custom_call.1} parent=15 // pred_check_branch
          %197 = sbr.rel (%p195) target = $region28
        $region27: #{tpu_custom_call.1} parent=15 // pred_region
          %p198 = scmp.lt.s32.totalorder %s22, 1
          %s199 = scalar_select %p198, %s22, 1
          %s200 = scalar_lea.vmem %s2, %s199
        $region28: #{tpu_custom_call.1} parent=15 // pred_fallthru
          _
      $region16: #{tpu_custom_call.1} parent=5 // pred_fallthru
        _
      %p201 = scmp.le.s32.totalorder 1, %s15
      %p202 = scmp.lt.s32.totalorder %s15, 3
      %p203 = pnand %p201, %p202
      %p204 = pneg %p203
      // Predicated region
      $region29: #{tpu_custom_call.1} parent=5 // pred_check
        _
      $region30: #{tpu_custom_call.1} parent=5 // pred_check_branch
        %206 = sbr.rel (%p203) target = $region32
      $region31: #{tpu_custom_call.1} parent=5 // pred_region
        %s207 = ssub.s32 %s15, 1
        %s208 = sand.u32 %s79, 1
        %s209 = scalar_lea.sflag [#allocation4], %s208
        %s210 = sand.u32 %s79, 1
        %s211 = smul.addr %s210, 8
        %s212 = scalar_lea.vmem [#allocation3], %s211
        // Predicated region
        $region33: #{tpu_custom_call.1} parent=31 // pred_check
          %p213 = pneg %p92
        $region34: #{tpu_custom_call.1} parent=31 // pred_check_branch
          %215 = sbr.rel (%p213) target = $region36
        $region35: #{tpu_custom_call.1} parent=31 // pred_region
          %217 = dma.done %s209, 128
        $region36: #{tpu_custom_call.1} parent=31 // pred_fallthru
          _
        %p218 = scmp.lt.s32.totalorder %s25, 1
        %s219 = scalar_select %p218, %s25, 1
        %p220 = scmp.lt.s32.totalorder %s27, 0
        %s221 = scalar_select %p220, %s27, 0
        %s222 = sadd.s32 %s221, %s219
        %s223 = scalar_lea.vmem %s0, %s222
        %p224 = pneg %p62
        %p225 = pneg %p59
        %s226 = sand.u32 %s79, 1
        %s227 = scalar_lea.sflag [#allocation4], %s226
        %s228 = sand.u32 %s79, 1
        %s229 = smul.addr %s228, 8
        %s230 = scalar_lea.vmem [#allocation3], %s229
        %p231 = pneg %p92
        %p232 = pneg %p89
        %p233 = scmp.lt.s32.totalorder %s25, 1
        %s234 = scalar_select %p233, %s25, 1
        %s235 = scalar_lea.vmem %s2, %s234
        %p236 = pneg %p118
        %p237 = pneg %p115
        %p238 = pneg %p146
        %p239 = pneg %p143
        %s240 = sand.u32 %s133, 1
        %s241 = scalar_lea.sflag [#allocation5], %s240
        %s242 = sand.u32 %s133, 1
        %s243 = scalar_lea.vmem [#allocation6], %s242
        %p244 = scmp.lt.s32.totalorder %s25, 1
        %s245 = scalar_select %p244, %s25, 1
        %p246 = scmp.lt.s32.totalorder %s27, 0
        %s247 = scalar_select %p246, %s27, 0
        %s248 = sadd.s32 %s247, %s245
        %s249 = scalar_lea.vmem %s0, %s248
        %p250 = scmp.lt.s32.totalorder %s25, 1
        %s251 = scalar_select %p250, %s25, 1
        %s252 = scalar_lea.vmem %s2, %s251
        %p253 = scmp.eq.s32.totalorder %s27, 0
        // Predicated region
        $region37: #{tpu_custom_call.1} parent=31 // pred_check
          %p254 = pneg %p253
        $region38: #{tpu_custom_call.1} parent=31 // pred_check_branch
          %256 = sbr.rel (%p254) target = $region40
        $region39: #{tpu_custom_call.1} parent=31 // pred_region
          %vm257 = vcmask 253952
          %258 = vst.msk [vmem:[#allocation2] sm:$0x1] %vm257, 0.0
        $region40: #{tpu_custom_call.1} parent=31 // pred_fallthru
          _
        %v259 = vld [vmem:[#allocation2] sm:$0x1]
        %v260 = vld [vmem:[%s249] sm:$0x1]
        %v261 = vld [vmem:[%s212] sm:$0xff]
        %vm262 = vcmask 64512
        %v264 = vsel %vm262, %v260, 0
        %266 = vmatpush.msra.mxu0 0.0
        %267 = vmatpush.msra.mxu0 0.0
        %268 = vmatpush.msra.mxu0 0.0
        %269 = vmatpush.msra.mxu0 0.0
        %270 = vmatpush.msra.mxu0 0.0
        %271 = vmatpush.msra.mxu0 0.0
        %272 = vmatpush.msra.mxu0 0.0
        %273 = vmatpush.msra.mxu0 0.0
        %274 = vmatpush.msra.mxu0 0.0
        %275 = vmatpush.msra.mxu0 0.0
        %276 = vmatpush.msra.mxu0 0.0
        %277 = vmatpush.msra.mxu0 0.0
        %278 = vmatpush.msra.mxu0 0.0
        %279 = vmatpush.msra.mxu0 0.0
        %280 = vmatpush.msra.mxu0 0.0
        %281 = vmatpush.msra.mxu0 %v261
        %282 = vmatmul.f32.gmra.mxu0 %v264
        %v283 = vpop.f32.mrf.mxu0
        %v284 = vadd.f32 0.0, %v283
        %285 = vdwg.mxu0
        %v286 = vadd.f32 %v259, %v284
        %vm287 = vcmask 253952
        %288 = vst.msk [vmem:[#allocation2] sm:$0x1] %vm287, %v286
        // Predicated region
        $region41: #{tpu_custom_call.1} parent=31 // pred_check
          %p289 = pneg %p253
        $region42: #{tpu_custom_call.1} parent=31 // pred_check_branch
          %291 = sbr.rel (%p289) target = $region44
        $region43: #{tpu_custom_call.1} parent=31 // pred_region
          %v292 = vld [vmem:[#allocation2] sm:$0x1]
          %v293 = vld [vmem:[%s252] sm:$0x1]
          %295 = vset.pattern.permute.xlu0 0
          %296 = vperm.xlu0 %295, %v293
          %v297 = vpop.permute.xlu0 %296
          %v299 = vperm.slane %v297, 0
          %v300 = vmul.f32 %v292, %v299
          %301 = vst.msk [vmem:[%s243] sm:$0x1] %vm287, %v300
        $region44: #{tpu_custom_call.1} parent=31 // pred_fallthru
          _
        %s302 = sand.u32 %s133, 1
        %s303 = scalar_lea.sflag [#allocation5], %s302
        %s304 = sand.u32 %s133, 1
        %s305 = scalar_lea.vmem [#allocation6], %s304
        // Predicated region
        $region45: #{tpu_custom_call.1} parent=31 // pred_check
          %p306 = pneg %p143
        $region46: #{tpu_custom_call.1} parent=31 // pred_check_branch
          %308 = sbr.rel (%p306) target = $region48
        $region47: #{tpu_custom_call.1} parent=31 // pred_region
          %310 = vsyncadd %s303, 0
          %s311 = sadd.s32 %s26, %s25
          %s312 = scalar_lea.hbm %s3, %s311
          %s314 = sshll.u32 %s305, 4
          %s315 = int_to_ptr.vmem [resolvable:$true] %s314
          %s316 = sshll.u32 %s312, 4
          %s317 = int_to_ptr.hbm [resolvable:$true] %s316
          %319 = dma.vmem_to_hbm [thread:$0]  %s315, 16, %s317, %s303
        $region48: #{tpu_custom_call.1} parent=31 // pred_fallthru
          _
      $region32: #{tpu_custom_call.1} parent=5 // pred_fallthru
        _
      %p320 = scmp.le.s32.totalorder 2, %s15
      // Predicated region
      $region49: #{tpu_custom_call.1} parent=5 // pred_check
        %p321 = pneg %p320
      $region50: #{tpu_custom_call.1} parent=5 // pred_check_branch
        %323 = sbr.rel (%p321) target = $region52
      $region51: #{tpu_custom_call.1} parent=5 // pred_region
        %s324 = ssub.s32 %s15, 2
        // Predicated region
        $region53: #{tpu_custom_call.1} parent=51 // pred_check
          %p325 = pneg %p149
        $region54: #{tpu_custom_call.1} parent=51 // pred_check_branch
          %327 = sbr.rel (%p325) target = $region56
        $region55: #{tpu_custom_call.1} parent=51 // pred_region
          %s328 = sand.u32 %s134, 1
          %s329 = scalar_lea.sflag [#allocation5], %s328
          %s330 = sand.u32 %s134, 1
          %s331 = scalar_lea.vmem [#allocation6], %s330
          %333 = dma.done %s329, 16
        $region56: #{tpu_custom_call.1} parent=51 // pred_fallthru
          _
      $region52: #{tpu_custom_call.1} parent=5 // pred_fallthru
        _
    $region6: #{tpu_custom_call.1} parent=1 // loop_footer
      %s19 = sadd.s32 1, %s15
    $region7: #{tpu_custom_call.1} parent=1 // loop_footer_branch
      %14 = sbr.rel target = $region3
    $region8: #{tpu_custom_call.1} parent=1 // loop_exit
      _
    %334 = vsyncpa [#allocation4], 1
    %s335 = scalar_lea.sflag [#allocation4], 1
    %336 = vsyncpa %s335, 1
    %337 = vsyncpa [#allocation5], 1
    %s338 = scalar_lea.sflag [#allocation5], 1
    %339 = vsyncpa %s338, 1

</llo_original>
